<compile_context>
chip_gen: v5e
topology: v5e:2x2
jax: 0.10.0
libtpu: 0.0.40
codegen_flags: <defaults>
</compile_context>

<pallas_src>
import functools

import jax
import jax.numpy as jnp
from jax import lax
from jax.experimental import pallas as pl
from jax.experimental.pallas import tpu as pltpu

_EPS = 1e-8          # PyTorch cosine_similarity eps
_INV_EPS = 1.0 / _EPS


def _round_up(x, m):
    return ((x + m - 1) // m) * m


def _sim_loss_kernel(num_segments,
                     starts_c_ref, ends_c_ref, starts_r_ref, ends_r_ref,
                     fake_ref, real_ref, out_ref):
    fake = fake_ref[...]                      # (Np, Dp) f32
    real = real_ref[...]                      # (Np, Dp) f32
    Np, _ = fake.shape
    Sp = starts_c_ref.shape[0]

    starts_c = starts_c_ref[...]              # (Sp, 1) int32
    ends_c = ends_c_ref[...]                  # (Sp, 1) int32
    starts_r = starts_r_ref[...]              # (1, Sp) int32
    ends_r = ends_r_ref[...]                  # (1, Sp) int32

    # Segment-membership masks, built once in both orientations (no transposes needed).
    col = lax.broadcasted_iota(jnp.int32, (Sp, Np), 1)
    mask_sn = jnp.logical_and(col >= starts_c, col < ends_c).astype(jnp.float32)  # (Sp, Np)
    row = lax.broadcasted_iota(jnp.int32, (Np, Sp), 0)
    mask_ns = jnp.logical_and(row >= starts_r, row < ends_r).astype(jnp.float32)  # (Np, Sp)

    # Segment sizes from the bounds; empty / padded segments -> inverse count 0.
    cnt_c = jnp.maximum(ends_c - starts_c, 0).astype(jnp.float32)                 # (Sp, 1)
    inv_cnt_c = jnp.where(cnt_c > 0, 1.0 / cnt_c, 0.0)
    cnt_r = jnp.maximum(ends_r - starts_r, 0).astype(jnp.float32)                 # (1, Sp)
    inv_cnt_r = jnp.where(cnt_r > 0, 1.0 / cnt_r, 0.0)

    # Segment means: one MXU matmul per tensor, (Sp, Np) @ (Np, Dp).
    mean_real = jnp.dot(mask_sn, real, preferred_element_type=jnp.float32) * inv_cnt_c
    mean_fake = jnp.dot(mask_sn, fake, preferred_element_type=jnp.float32) * inv_cnt_c

    # Inverse norms via rsqrt (EUP); min(., 1/eps) == 1 / max(||x||, eps) as in torch.
    inv_norm_fake = jnp.minimum(
        lax.rsqrt(jnp.sum(fake * fake, axis=1, keepdims=True)), _INV_EPS)         # (Np, 1)
    inv_norm_real = jnp.minimum(
        lax.rsqrt(jnp.sum(real * real, axis=1, keepdims=True)), _INV_EPS)         # (Np, 1)
    inv_norm_mr = jnp.minimum(
        lax.rsqrt(jnp.sum(mean_real * mean_real, axis=1, keepdims=True)), _INV_EPS)  # (Sp, 1)
    inv_norm_mf = jnp.minimum(
        lax.rsqrt(jnp.sum(mean_fake * mean_fake, axis=1, keepdims=True)), _INV_EPS)  # (Sp, 1)

    # Fold the mean-vector norm into the mean before the MXU dot; apply the per-row
    # norm to the small (Np, Sp) result instead of the (Np, Dp) operand.
    mr_hat = mean_real * inv_norm_mr                                              # (Sp, Dp)
    mf_hat = mean_fake * inv_norm_mf

    dims = (((1,), (1,)), ((), ()))   # contract the feature dim of both operands
    cos_a = lax.dot_general(fake, mr_hat, dims,
                            preferred_element_type=jnp.float32) * inv_norm_fake   # (Np, Sp)
    cos_b = lax.dot_general(real, mf_hat, dims,
                            preferred_element_type=jnp.float32) * inv_norm_real   # (Np, Sp)

    # CosineEmbeddingLoss with target = -1, margin 0  ->  mean_i relu(cos) per segment.
    l_a = jnp.sum(jnp.maximum(cos_a, 0.0) * mask_ns, axis=0, keepdims=True) * inv_cnt_r
    l_b = jnp.sum(jnp.maximum(cos_b, 0.0) * mask_ns, axis=0, keepdims=True) * inv_cnt_r

    out_ref[...] = jnp.sum(l_a + l_b, axis=1, keepdims=True) * (1.0 / float(num_segments))


def sim_backward_loss(fake, real, seg_starts, seg_ends):
    """fake, real: (N, D) float arrays.  seg_starts/seg_ends: (S,) int32 boundaries."""
    N, D = fake.shape
    S = int(seg_starts.shape[0])

    Np = _round_up(max(N, 8), 8)        # sublane-aligned rows
    Dp = _round_up(max(D, 128), 128)    # lane-dense feature dim
    Sp = _round_up(max(S, 8), 8)        # padded segments are empty -> contribute 0

    fake_p = jnp.zeros((Np, Dp), jnp.float32).at[:N, :D].set(fake.astype(jnp.float32))
    real_p = jnp.zeros((Np, Dp), jnp.float32).at[:N, :D].set(real.astype(jnp.float32))

    starts = jnp.zeros((Sp,), jnp.int32).at[:S].set(seg_starts.astype(jnp.int32))
    ends = jnp.zeros((Sp,), jnp.int32).at[:S].set(seg_ends.astype(jnp.int32))
    starts_c = starts.reshape(Sp, 1)
    ends_c = ends.reshape(Sp, 1)
    starts_r = starts.reshape(1, Sp)
    ends_r = ends.reshape(1, Sp)

    out = pl.pallas_call(
        functools.partial(_sim_loss_kernel, S),
        out_shape=jax.ShapeDtypeStruct((1, 1), jnp.float32),
        in_specs=[pl.BlockSpec(memory_space=pltpu.MemorySpace.VMEM)] * 6,
        out_specs=pl.BlockSpec(memory_space=pltpu.MemorySpace.VMEM),
    )(starts_c, ends_c, starts_r, ends_r, fake_p, real_p)
    return out[0, 0]


def _reference(fake, real, label_cuts):
    """Pure-JAX reference mirroring the PyTorch module."""
    losses = []
    for a, b in label_cuts:
        f = fake[a:b]
        r = real[a:b]
        mr = r.mean(0, keepdims=True)
        mf = f.mean(0, keepdims=True)

        def cos(x, y):
            nx = jnp.maximum(jnp.linalg.norm(x, axis=-1), _EPS)
            ny = jnp.maximum(jnp.linalg.norm(y, axis=-1), _EPS)
            return jnp.sum(x * y, axis=-1) / (nx * ny)

        l_a = jnp.mean(jnp.maximum(cos(f, mr), 0.0))
        l_b = jnp.mean(jnp.maximum(cos(r, mf), 0.0))
        losses.append(l_a + l_b)
    return sum(losses) / len(losses)


if __name__ == "__main__":
    key = jax.random.PRNGKey(0)
    k1, k2 = jax.random.split(key)

    N, D = 8, 32
    fake = jax.random.normal(k1, (N, D), dtype=jnp.float32)
    real = jax.random.normal(k2, (N, D), dtype=jnp.float32)

    # label_cuts: static list of (a, b) segment boundaries covering [0, N)
    label_cuts = [(0, 3), (3, 8)]
    seg_starts = jnp.array([a for a, _ in label_cuts], dtype=jnp.int32)
    seg_ends = jnp.array([b for _, b in label_cuts], dtype=jnp.int32)

    loss = jax.block_until_ready(sim_backward_loss(fake, real, seg_starts, seg_ends))

    ref = _reference(fake, real, label_cuts)
    assert jnp.allclose(loss, ref, atol=1e-5, rtol=1e-5), (loss, ref)

    print("KERNEL_OK")
</pallas_src>

<mosaic_0001>
module attributes {stable_mosaic.version = 11 : i64} {
  func.func @_sim_loss_kernel(%arg0: memref<8x1xi32, #tpu.memory_space<vmem>>, %arg1: memref<8x1xi32, #tpu.memory_space<vmem>>, %arg2: memref<1x8xi32, #tpu.memory_space<vmem>>, %arg3: memref<1x8xi32, #tpu.memory_space<vmem>>, %arg4: memref<8x128xf32, #tpu.memory_space<vmem>>, %arg5: memref<8x128xf32, #tpu.memory_space<vmem>>, %arg6: memref<1x1xf32, #tpu.memory_space<vmem>>) attributes {dimension_semantics = [], scalar_prefetch = 0 : i64, scratch_operands = 0 : i64, tpu.core_type = #tpu.core_type<tc>} {
    %c0 = arith.constant 0 : index
    %c0_0 = arith.constant 0 : index
    %0 = vector.load %arg4[%c0, %c0_0] : memref<8x128xf32, #tpu.memory_space<vmem>>, vector<8x128xf32>
    %c0_1 = arith.constant 0 : index
    %c0_2 = arith.constant 0 : index
    %1 = vector.load %arg5[%c0_1, %c0_2] : memref<8x128xf32, #tpu.memory_space<vmem>>, vector<8x128xf32>
    %c0_3 = arith.constant 0 : index
    %c0_4 = arith.constant 0 : index
    %2 = vector.load %arg0[%c0_3, %c0_4] : memref<8x1xi32, #tpu.memory_space<vmem>>, vector<8x1xi32>
    %c0_5 = arith.constant 0 : index
    %c0_6 = arith.constant 0 : index
    %3 = vector.load %arg1[%c0_5, %c0_6] : memref<8x1xi32, #tpu.memory_space<vmem>>, vector<8x1xi32>
    %c0_7 = arith.constant 0 : index
    %c0_8 = arith.constant 0 : index
    %4 = vector.load %arg2[%c0_7, %c0_8] : memref<1x8xi32, #tpu.memory_space<vmem>>, vector<1x8xi32>
    %c0_9 = arith.constant 0 : index
    %c0_10 = arith.constant 0 : index
    %5 = vector.load %arg3[%c0_9, %c0_10] : memref<1x8xi32, #tpu.memory_space<vmem>>, vector<1x8xi32>
    %6 = tpu.iota {dimensions = array<i32: 1>} : vector<8x8xi32>
    %7 = vector.broadcast %2 : vector<8x1xi32> to vector<8x8xi32>
    %8 = arith.cmpi sge, %6, %7 : vector<8x8xi32>
    %9 = vector.broadcast %3 : vector<8x1xi32> to vector<8x8xi32>
    %10 = arith.cmpi slt, %6, %9 : vector<8x8xi32>
    %11 = arith.andi %8, %10 : vector<8x8xi1>
    %12 = arith.extui %11 : vector<8x8xi1> to vector<8x8xi32>
    %13 = arith.sitofp %12 : vector<8x8xi32> to vector<8x8xf32>
    %14 = tpu.iota {dimensions = array<i32: 0>} : vector<8x8xi32>
    %15 = vector.broadcast %4 : vector<1x8xi32> to vector<8x8xi32>
    %16 = arith.cmpi sge, %14, %15 : vector<8x8xi32>
    %17 = vector.broadcast %5 : vector<1x8xi32> to vector<8x8xi32>
    %18 = arith.cmpi slt, %14, %17 : vector<8x8xi32>
    %19 = arith.andi %16, %18 : vector<8x8xi1>
    %20 = arith.extui %19 : vector<8x8xi1> to vector<8x8xi32>
    %21 = arith.sitofp %20 : vector<8x8xi32> to vector<8x8xf32>
    %22 = arith.subi %3, %2 : vector<8x1xi32>
    %c0_i32 = arith.constant 0 : i32
    %23 = vector.broadcast %c0_i32 : i32 to vector<8x1xi32>
    %24 = arith.maxsi %22, %23 : vector<8x1xi32>
    %25 = arith.sitofp %24 : vector<8x1xi32> to vector<8x1xf32>
    %cst = arith.constant 0.000000e+00 : f32
    %26 = vector.broadcast %cst : f32 to vector<8x1xf32>
    %27 = arith.cmpf ogt, %25, %26 : vector<8x1xf32>
    %cst_11 = arith.constant 1.000000e+00 : f32
    %28 = vector.broadcast %cst_11 : f32 to vector<8x1xf32>
    %29 = arith.divf %28, %25 : vector<8x1xf32>
    %cst_12 = arith.constant 0.000000e+00 : f32
    %30 = vector.broadcast %cst_12 : f32 to vector<8x1xf32>
    %31 = arith.select %27, %29, %30 : vector<8x1xi1>, vector<8x1xf32>
    %32 = arith.subi %5, %4 : vector<1x8xi32>
    %c0_i32_13 = arith.constant 0 : i32
    %33 = vector.broadcast %c0_i32_13 : i32 to vector<1x8xi32>
    %34 = arith.maxsi %32, %33 : vector<1x8xi32>
    %35 = arith.sitofp %34 : vector<1x8xi32> to vector<1x8xf32>
    %cst_14 = arith.constant 0.000000e+00 : f32
    %36 = vector.broadcast %cst_14 : f32 to vector<1x8xf32>
    %37 = arith.cmpf ogt, %35, %36 : vector<1x8xf32>
    %cst_15 = arith.constant 1.000000e+00 : f32
    %38 = vector.broadcast %cst_15 : f32 to vector<1x8xf32>
    %39 = arith.divf %38, %35 : vector<1x8xf32>
    %cst_16 = arith.constant 0.000000e+00 : f32
    %40 = vector.broadcast %cst_16 : f32 to vector<1x8xf32>
    %41 = arith.select %37, %39, %40 : vector<1x8xi1>, vector<1x8xf32>
    %cst_17 = arith.constant dense<0.000000e+00> : vector<8x128xf32>
    %42 = tpu.matmul %13, %1, %cst_17 {dimension_numbers = #tpu.dot_dimension_numbers<[1], [0], [0], [1], [0, 0, 1, 1], [], []>} : vector<8x8xf32>, vector<8x128xf32>, vector<8x128xf32> -> vector<8x128xf32>
    %43 = vector.broadcast %31 : vector<8x1xf32> to vector<8x128xf32>
    %44 = arith.mulf %42, %43 : vector<8x128xf32>
    %cst_18 = arith.constant dense<0.000000e+00> : vector<8x128xf32>
    %45 = tpu.matmul %13, %0, %cst_18 {dimension_numbers = #tpu.dot_dimension_numbers<[1], [0], [0], [1], [0, 0, 1, 1], [], []>} : vector<8x8xf32>, vector<8x128xf32>, vector<8x128xf32> -> vector<8x128xf32>
    %46 = vector.broadcast %31 : vector<8x1xf32> to vector<8x128xf32>
    %47 = arith.mulf %45, %46 : vector<8x128xf32>
    %48 = arith.mulf %0, %0 : vector<8x128xf32>
    %cst_19 = arith.constant dense<0.000000e+00> : vector<8xf32>
    %49 = vector.multi_reduction <add>, %48, %cst_19 [1] : vector<8x128xf32> to vector<8xf32>
    %50 = vector.shape_cast %49 : vector<8xf32> to vector<8x1xf32>
    %51 = math.rsqrt %50 : vector<8x1xf32>
    %cst_20 = arith.constant 1.000000e+08 : f32
    %52 = vector.broadcast %cst_20 : f32 to vector<8x1xf32>
    %53 = arith.minimumf %51, %52 : vector<8x1xf32>
    %54 = arith.mulf %1, %1 : vector<8x128xf32>
    %cst_21 = arith.constant dense<0.000000e+00> : vector<8xf32>
    %55 = vector.multi_reduction <add>, %54, %cst_21 [1] : vector<8x128xf32> to vector<8xf32>
    %56 = vector.shape_cast %55 : vector<8xf32> to vector<8x1xf32>
    %57 = math.rsqrt %56 : vector<8x1xf32>
    %cst_22 = arith.constant 1.000000e+08 : f32
    %58 = vector.broadcast %cst_22 : f32 to vector<8x1xf32>
    %59 = arith.minimumf %57, %58 : vector<8x1xf32>
    %60 = arith.mulf %44, %44 : vector<8x128xf32>
    %cst_23 = arith.constant dense<0.000000e+00> : vector<8xf32>
    %61 = vector.multi_reduction <add>, %60, %cst_23 [1] : vector<8x128xf32> to vector<8xf32>
    %62 = vector.shape_cast %61 : vector<8xf32> to vector<8x1xf32>
    %63 = math.rsqrt %62 : vector<8x1xf32>
    %cst_24 = arith.constant 1.000000e+08 : f32
    %64 = vector.broadcast %cst_24 : f32 to vector<8x1xf32>
    %65 = arith.minimumf %63, %64 : vector<8x1xf32>
    %66 = arith.mulf %47, %47 : vector<8x128xf32>
    %cst_25 = arith.constant dense<0.000000e+00> : vector<8xf32>
    %67 = vector.multi_reduction <add>, %66, %cst_25 [1] : vector<8x128xf32> to vector<8xf32>
    %68 = vector.shape_cast %67 : vector<8xf32> to vector<8x1xf32>
    %69 = math.rsqrt %68 : vector<8x1xf32>
    %cst_26 = arith.constant 1.000000e+08 : f32
    %70 = vector.broadcast %cst_26 : f32 to vector<8x1xf32>
    %71 = arith.minimumf %69, %70 : vector<8x1xf32>
    %72 = vector.broadcast %65 : vector<8x1xf32> to vector<8x128xf32>
    %73 = arith.mulf %44, %72 : vector<8x128xf32>
    %74 = vector.broadcast %71 : vector<8x1xf32> to vector<8x128xf32>
    %75 = arith.mulf %47, %74 : vector<8x128xf32>
    %cst_27 = arith.constant dense<0.000000e+00> : vector<8x8xf32>
    %76 = tpu.matmul %0, %73, %cst_27 {dimension_numbers = #tpu.dot_dimension_numbers<[1], [1], [0], [0], [0, 0, 1, 0], [], []>} : vector<8x128xf32>, vector<8x128xf32>, vector<8x8xf32> -> vector<8x8xf32>
    %77 = vector.broadcast %53 : vector<8x1xf32> to vector<8x8xf32>
    %78 = arith.mulf %76, %77 : vector<8x8xf32>
    %cst_28 = arith.constant dense<0.000000e+00> : vector<8x8xf32>
    %79 = tpu.matmul %1, %75, %cst_28 {dimension_numbers = #tpu.dot_dimension_numbers<[1], [1], [0], [0], [0, 0, 1, 0], [], []>} : vector<8x128xf32>, vector<8x128xf32>, vector<8x8xf32> -> vector<8x8xf32>
    %80 = vector.broadcast %59 : vector<8x1xf32> to vector<8x8xf32>
    %81 = arith.mulf %79, %80 : vector<8x8xf32>
    %cst_29 = arith.constant 0.000000e+00 : f32
    %82 = vector.broadcast %cst_29 : f32 to vector<8x8xf32>
    %83 = arith.maximumf %78, %82 : vector<8x8xf32>
    %84 = arith.mulf %83, %21 : vector<8x8xf32>
    %cst_30 = arith.constant dense<0.000000e+00> : vector<8xf32>
    %85 = vector.multi_reduction <add>, %84, %cst_30 [0] : vector<8x8xf32> to vector<8xf32>
    %86 = vector.shape_cast %85 : vector<8xf32> to vector<1x8xf32>
    %87 = arith.mulf %86, %41 : vector<1x8xf32>
    %cst_31 = arith.constant 0.000000e+00 : f32
    %88 = vector.broadcast %cst_31 : f32 to vector<8x8xf32>
    %89 = arith.maximumf %81, %88 : vector<8x8xf32>
    %90 = arith.mulf %89, %21 : vector<8x8xf32>
    %cst_32 = arith.constant dense<0.000000e+00> : vector<8xf32>
    %91 = vector.multi_reduction <add>, %90, %cst_32 [0] : vector<8x8xf32> to vector<8xf32>
    %92 = vector.shape_cast %91 : vector<8xf32> to vector<1x8xf32>
    %93 = arith.mulf %92, %41 : vector<1x8xf32>
    %94 = arith.addf %87, %93 : vector<1x8xf32>
    %cst_33 = arith.constant dense<0.000000e+00> : vector<1xf32>
    %95 = vector.multi_reduction <add>, %94, %cst_33 [1] : vector<1x8xf32> to vector<1xf32>
    %96 = vector.shape_cast %95 : vector<1xf32> to vector<1x1xf32>
    %cst_34 = arith.constant 5.000000e-01 : f32
    %97 = vector.broadcast %cst_34 : f32 to vector<1x1xf32>
    %98 = arith.mulf %96, %97 : vector<1x1xf32>
    %c0_35 = arith.constant 0 : index
    %c0_36 = arith.constant 0 : index
    %99 = vector.load %arg6[%c0_35, %c0_36] : memref<1x1xf32, #tpu.memory_space<vmem>>, vector<1x1xf32>
    tpu.vector_store %arg6[%c0_35, %c0_36], %98 {strides = array<i32>} : memref<1x1xf32, #tpu.memory_space<vmem>>, vector<1x1xf32>,
    return
  }
}

</mosaic_0001>

<llo_original>
// kernel: tpu_custom_call.1
$region0: #{tpu_custom_call.1}
  #allocation0 [shape = 'u32[]', space=smem, size = 0x4, offset = 0x4, fixed_abs, tag = 'smem constant byte address 0x4 - core index']
  #allocation1 [shape = 'u32[72,128]{1,0:T(1,128)}', space=vmem, size = 0x9000, scoped, tag = 'internal scratch']
  %s0 = inlined_call_operand.vmem [shape: s32[8,1], index: 0, kind: input, shape index: {}]
  %s1 = inlined_call_operand.vmem [shape: s32[8,1], index: 1, kind: input, shape index: {}]
  %s2 = inlined_call_operand.vmem [shape: s32[1,8], index: 2, kind: input, shape index: {}]
  %s3 = inlined_call_operand.vmem [shape: s32[1,8], index: 3, kind: input, shape index: {}]
  %s4 = inlined_call_operand.vmem [shape: f32[8,128], index: 4, kind: input, shape index: {}]
  %s5 = inlined_call_operand.vmem [shape: f32[8,128], index: 5, kind: input, shape index: {}]
  %s6 = inlined_call_operand.hbm [shape: f32[1,1], index: 6, kind: output, shape index: {}]
  %s7 = sld [smem:[#allocation0]]
  $region34: #{tpu_custom_call.1} parent=0
    _
  %s9 = ssub.s32 1, %s7
  %s10 = scalar_select 0, %s9, %s7
  $region1: #{tpu_custom_call.1} parent=0
    #allocation2 [shape = 'u8[512]{0}', space=vmem, size = 0x400, scoped, tag = 'output window, operand 0, single buffered']
    #allocation3 [shape = 's32[1]{0}', space=sflag, size = 0x4, scoped, tag = 'scoped memory for tpu_custom_call.1']
    %11 = vsyncpa [#allocation3], 0
    // Predicated region
    $region2: #{tpu_custom_call.1} parent=1 // pred_check
      _
    $region3: #{tpu_custom_call.1} parent=1 // pred_check_branch
      %13 = sbr.rel (0) target = $region5
    $region4: #{tpu_custom_call.1} parent=1 // pred_region
      _
    $region5: #{tpu_custom_call.1} parent=1 // pred_fallthru
      _
    // Predicated region
    $region6: #{tpu_custom_call.1} parent=1 // pred_check
      _
    $region7: #{tpu_custom_call.1} parent=1 // pred_check_branch
      %15 = sbr.rel (0) target = $region9
    $region8: #{tpu_custom_call.1} parent=1 // pred_region
      _
    $region9: #{tpu_custom_call.1} parent=1 // pred_fallthru
      _
    // Predicated region
    $region10: #{tpu_custom_call.1} parent=1 // pred_check
      _
    $region11: #{tpu_custom_call.1} parent=1 // pred_check_branch
      %17 = sbr.rel (0) target = $region13
    $region12: #{tpu_custom_call.1} parent=1 // pred_region
      _
    $region13: #{tpu_custom_call.1} parent=1 // pred_fallthru
      _
    // Predicated region
    $region14: #{tpu_custom_call.1} parent=1 // pred_check
      _
    $region15: #{tpu_custom_call.1} parent=1 // pred_check_branch
      %19 = sbr.rel (0) target = $region17
    $region16: #{tpu_custom_call.1} parent=1 // pred_region
      _
    $region17: #{tpu_custom_call.1} parent=1 // pred_fallthru
      _
    // Predicated region
    $region18: #{tpu_custom_call.1} parent=1 // pred_check
      _
    $region19: #{tpu_custom_call.1} parent=1 // pred_check_branch
      %21 = sbr.rel (0) target = $region21
    $region20: #{tpu_custom_call.1} parent=1 // pred_region
      _
    $region21: #{tpu_custom_call.1} parent=1 // pred_fallthru
      _
    // Predicated region
    $region22: #{tpu_custom_call.1} parent=1 // pred_check
      _
    $region23: #{tpu_custom_call.1} parent=1 // pred_check_branch
      %23 = sbr.rel (0) target = $region25
    $region24: #{tpu_custom_call.1} parent=1 // pred_region
      _
    $region25: #{tpu_custom_call.1} parent=1 // pred_fallthru
      _
    %v24 = vld [vmem:[%s4] sm:$0xff]
    %v25 = vld [vmem:[%s5] sm:$0xff]
    %v26 = vld [vmem:[%s0] sm:$0xff]
    %v27 = vld [vmem:[%s1] sm:$0xff]
    %v28 = vld [vmem:[%s2] sm:$0x1]
    %v29 = vld [vmem:[%s3] sm:$0x1]
    %v30 = vlaneseq
    %v31 = vand.u32 %v30, 127
    %32 = vset.pattern.permute.xlu0 0
    %33 = vperm.xlu0 %32, %v26
    %v34 = vpop.permute.xlu0 %33
    %vm35 = vcmp.ge.s32.totalorder %v31, %v34
    %36 = vset.pattern.permute.xlu0 0
    %37 = vperm.xlu0 %36, %v27
    %v38 = vpop.permute.xlu0 %37
    %vm39 = vcmp.lt.s32.totalorder %v31, %v38
    %vm40 = vmand %vm35, %vm39
    %v41 = vsel %vm40, 1, 0
    %v42 = vcvt.s32.f32 %v41
    %v43 = vlaneseq
    %v44 = vshrl.u32 %v43, 7
    %v45 = vperm.slane %v28, 0
    %vm46 = vcmp.ge.s32.totalorder %v44, %v45
    %v47 = vperm.slane %v29, 0
    %vm48 = vcmp.lt.s32.totalorder %v44, %v47
    %vm49 = vmand %vm46, %vm48
    %v50 = vsel %vm49, 1, 0
    %v51 = vcvt.s32.f32 %v50
    %v52 = vsub.s32 %v27, %v26
    %vm53 = vcmp.gt.s32.totalorder %v52, 0
    %v54 = vsel %vm53, %v52, 0
    %v55 = vcvt.s32.f32 %v54
    %vm56 = vcmp.gt.f32.partialorder %v55, 0.0
    %v57 = vrcp.pop %v55
    %v58 = vmul.f32 %v55, %v57
    %v59 = vsub.f32 1.0, %v58
    %v60 = vmul.f32 %v57, %v59
    %v61 = vadd.f32 %v57, %v60
    %vm62 = vweird.f32 %v55
    %vm63 = vweird.f32 %v57
    %vm64 = vmor %vm62, %vm63
    %v65 = vsel %vm64, %v57, %v61
    %v66 = vand.u32 2147483647, %v55
    %vm67 = vcmp.eq.f32.partialorder %v66, 8.507059e+37
    %v68 = vand.u32 %v55, 2147483648
    %v69 = vor.u32 1.1754944e-38, %v68
    %v70 = vsel %vm67, %v69, %v65
    %v71 = vmul.f32 1.0, %v70
    %v72 = vsel %vm56, %v71, 0.0
    %v73 = vsub.s32 %v29, %v28
    %vm74 = vcmp.gt.s32.totalorder %v73, 0
    %v75 = vsel %vm74, %v73, 0
    %v76 = vcvt.s32.f32 %v75
    %vm77 = vcmp.gt.f32.partialorder %v76, 0.0
    %v78 = vrcp.pop %v76
    %v79 = vmul.f32 %v76, %v78
    %v80 = vsub.f32 1.0, %v79
    %v81 = vmul.f32 %v78, %v80
    %v82 = vadd.f32 %v78, %v81
    %vm83 = vweird.f32 %v76
    %vm84 = vweird.f32 %v78
    %vm85 = vmor %vm83, %vm84
    %v86 = vsel %vm85, %v78, %v82
    %v87 = vand.u32 2147483647, %v76
    %vm88 = vcmp.eq.f32.partialorder %v87, 8.507059e+37
    %v89 = vand.u32 %v76, 2147483648
    %v90 = vor.u32 1.1754944e-38, %v89
    %v91 = vsel %vm88, %v90, %v86
    %v92 = vmul.f32 1.0, %v91
    %v93 = vsel %vm77, %v92, 0.0
    %vm94 = vcmask 64512
    %v96 = vsel %vm94, %v42, 0
    %98 = vmatpush.msra.mxu0 0.0
    %99 = vmatpush.msra.mxu0 0.0
    %100 = vmatpush.msra.mxu0 0.0
    %101 = vmatpush.msra.mxu0 0.0
    %102 = vmatpush.msra.mxu0 0.0
    %103 = vmatpush.msra.mxu0 0.0
    %104 = vmatpush.msra.mxu0 0.0
    %105 = vmatpush.msra.mxu0 0.0
    %106 = vmatpush.msra.mxu0 0.0
    %107 = vmatpush.msra.mxu0 0.0
    %108 = vmatpush.msra.mxu0 0.0
    %109 = vmatpush.msra.mxu0 0.0
    %110 = vmatpush.msra.mxu0 0.0
    %111 = vmatpush.msra.mxu0 0.0
    %112 = vmatpush.msra.mxu0 0.0
    %113 = vmatpush.msra.mxu0 %v25
    %114 = vmatmul.f32.gmra.mxu0 %v96
    %v115 = vpop.f32.mrf.mxu0
    %v116 = vadd.f32 0.0, %v115
    %117 = vdwg.mxu0
    %119 = vset.pattern.permute.xlu0 0
    %120 = vperm.xlu0 %119, %v72
    %v121 = vpop.permute.xlu0 %120
    %v123 = vmul.f32 %v116, %v121
    %124 = vmatpush.msra.mxu0 0.0
    %125 = vmatpush.msra.mxu0 0.0
    %126 = vmatpush.msra.mxu0 0.0
    %127 = vmatpush.msra.mxu0 0.0
    %128 = vmatpush.msra.mxu0 0.0
    %129 = vmatpush.msra.mxu0 0.0
    %130 = vmatpush.msra.mxu0 0.0
    %131 = vmatpush.msra.mxu0 0.0
    %132 = vmatpush.msra.mxu0 0.0
    %133 = vmatpush.msra.mxu0 0.0
    %134 = vmatpush.msra.mxu0 0.0
    %135 = vmatpush.msra.mxu0 0.0
    %136 = vmatpush.msra.mxu0 0.0
    %137 = vmatpush.msra.mxu0 0.0
    %138 = vmatpush.msra.mxu0 0.0
    %139 = vmatpush.msra.mxu0 %v24
    %140 = vmatmul.f32.gmra.mxu0 %v96
    %v141 = vpop.f32.mrf.mxu0
    %v142 = vadd.f32 0.0, %v141
    %143 = vdwg.mxu0
    %v144 = vmul.f32 %v142, %v121
    %v145 = vmul.f32 %v24, %v24
    %146 = vadd.xlane.f32.xlu0 %v145
    %v147 = vpop.xlane.xlu0 %146
    %v148 = vrsqrt.pop %v147
    %v149 = vmul.f32 %v148, %v147
    %v150 = vmul.f32 %v149, %v148
    %v151 = vmul.f32 0.5, %v150
    %v152 = vsub.f32 1.5, %v151
    %v153 = vmul.f32 %v148, %v152
    %vm154 = vweird.f32 %v147
    %vm155 = vweird.f32 %v148
    %vm156 = vmor %vm154, %vm155
    %v157 = vsel %vm156, %v148, %v153
    %v158 = vmin.f32 %v157, 1e+08
    %v159 = vmul.f32 %v25, %v25
    %160 = vadd.xlane.f32.xlu0 %v159
    %v161 = vpop.xlane.xlu0 %160
    %v162 = vrsqrt.pop %v161
    %v163 = vmul.f32 %v162, %v161
    %v164 = vmul.f32 %v163, %v162
    %v165 = vmul.f32 0.5, %v164
    %v166 = vsub.f32 1.5, %v165
    %v167 = vmul.f32 %v162, %v166
    %vm168 = vweird.f32 %v161
    %vm169 = vweird.f32 %v162
    %vm170 = vmor %vm168, %vm169
    %v171 = vsel %vm170, %v162, %v167
    %v172 = vmin.f32 %v171, 1e+08
    %v173 = vmul.f32 %v123, %v123
    %174 = vadd.xlane.f32.xlu0 %v173
    %v175 = vpop.xlane.xlu0 %174
    %v176 = vrsqrt.pop %v175
    %v177 = vmul.f32 %v176, %v175
    %v178 = vmul.f32 %v177, %v176
    %v179 = vmul.f32 0.5, %v178
    %v180 = vsub.f32 1.5, %v179
    %v181 = vmul.f32 %v176, %v180
    %vm182 = vweird.f32 %v175
    %vm183 = vweird.f32 %v176
    %vm184 = vmor %vm182, %vm183
    %v185 = vsel %vm184, %v176, %v181
    %v186 = vmin.f32 %v185, 1e+08
    %v187 = vmul.f32 %v144, %v144
    %188 = vadd.xlane.f32.xlu0 %v187
    %v189 = vpop.xlane.xlu0 %188
    %v190 = vrsqrt.pop %v189
    %v191 = vmul.f32 %v190, %v189
    %v192 = vmul.f32 %v191, %v190
    %v193 = vmul.f32 0.5, %v192
    %v194 = vsub.f32 1.5, %v193
    %v195 = vmul.f32 %v190, %v194
    %vm196 = vweird.f32 %v189
    %vm197 = vweird.f32 %v190
    %vm198 = vmor %vm196, %vm197
    %v199 = vsel %vm198, %v190, %v195
    %v200 = vmin.f32 %v199, 1e+08
    %v201 = vmul.f32 %v123, %v186
    %v202 = vmul.f32 %v144, %v200
    %203 = vmatpush.xpose.msra.mxu0 0.0
    %204 = vmatpush.xpose.msra.mxu0 0.0
    %205 = vmatpush.xpose.msra.mxu0 0.0
    %206 = vmatpush.xpose.msra.mxu0 0.0
    %207 = vmatpush.xpose.msra.mxu0 0.0
    %208 = vmatpush.xpose.msra.mxu0 0.0
    %209 = vmatpush.xpose.msra.mxu0 0.0
    %210 = vmatpush.xpose.msra.mxu0 0.0
    %211 = vmatpush.xpose.msra.mxu0 0.0
    %212 = vmatpush.xpose.msra.mxu0 0.0
    %213 = vmatpush.xpose.msra.mxu0 0.0
    %214 = vmatpush.xpose.msra.mxu0 0.0
    %215 = vmatpush.xpose.msra.mxu0 0.0
    %216 = vmatpush.xpose.msra.mxu0 0.0
    %217 = vmatpush.xpose.msra.mxu0 0.0
    %218 = vmatpush.xpose.msra.mxu0 %v201
    %219 = vmatmul.f32.gmra.mxu0 %v24
    %v220 = vpop.f32.mrf.mxu0
    %v221 = vadd.f32 0.0, %v220
    %222 = vdwg.mxu0
    %v223 = vmul.f32 %v221, %v158
    %224 = vmatpush.xpose.msra.mxu0 0.0
    %225 = vmatpush.xpose.msra.mxu0 0.0
    %226 = vmatpush.xpose.msra.mxu0 0.0
    %227 = vmatpush.xpose.msra.mxu0 0.0
    %228 = vmatpush.xpose.msra.mxu0 0.0
    %229 = vmatpush.xpose.msra.mxu0 0.0
    %230 = vmatpush.xpose.msra.mxu0 0.0
    %231 = vmatpush.xpose.msra.mxu0 0.0
    %232 = vmatpush.xpose.msra.mxu0 0.0
    %233 = vmatpush.xpose.msra.mxu0 0.0
    %234 = vmatpush.xpose.msra.mxu0 0.0
    %235 = vmatpush.xpose.msra.mxu0 0.0
    %236 = vmatpush.xpose.msra.mxu0 0.0
    %237 = vmatpush.xpose.msra.mxu0 0.0
    %238 = vmatpush.xpose.msra.mxu0 0.0
    %239 = vmatpush.xpose.msra.mxu0 %v202
    %240 = vmatmul.f32.gmra.mxu0 %v25
    %v241 = vpop.f32.mrf.mxu0
    %v242 = vadd.f32 0.0, %v241
    %243 = vdwg.mxu0
    %v244 = vmul.f32 %v242, %v172
    %v245 = vmax.f32 %v223, 0.0
    %v246 = vmul.f32 %v245, %v51
    %v247 = vsel %vm94, %v246, 0.0
    %v248 = vrot.slane %v247, 4
    %v249 = vadd.f32 %v247, %v248
    %v250 = vrot.slane %v249, 2
    %v251 = vadd.f32 %v249, %v250
    %v252 = vrot.slane %v251, 1
    %v253 = vadd.f32 %v251, %v252
    %v254 = vmul.f32 %v253, %v93
    %v255 = vmax.f32 %v244, 0.0
    %v256 = vmul.f32 %v255, %v51
    %v257 = vsel %vm94, %v256, 0.0
    %v258 = vrot.slane %v257, 4
    %v259 = vadd.f32 %v257, %v258
    %v260 = vrot.slane %v259, 2
    %v261 = vadd.f32 %v259, %v260
    %v262 = vrot.slane %v261, 1
    %v263 = vadd.f32 %v261, %v262
    %v264 = vmul.f32 %v263, %v93
    %v265 = vadd.f32 %v254, %v264
    %vm266 = vcmask 57344
    %v267 = vsel %vm266, %v265, 0.0
    %268 = vadd.xlane.f32.xlu0 %v267
    %v269 = vpop.xlane.xlu0 %268
    %v270 = vmul.f32 %v269, 0.5
    %vm271 = vcmask 0
    %272 = vst.msk [vmem:[#allocation2] sm:$0x1] %vm271, %v270
    // Predicated region
    $region26: #{tpu_custom_call.1} parent=1 // pred_check
      _
    $region27: #{tpu_custom_call.1} parent=1 // pred_check_branch
      %274 = sbr.rel (0) target = $region29
    $region28: #{tpu_custom_call.1} parent=1 // pred_region
      %276 = vsyncadd [#allocation3], 0
      %s278 = sshll.u32 [#allocation2], 4
      %s279 = int_to_ptr.vmem [resolvable:$true] %s278
      %s280 = sshll.u32 %s6, 4
      %s281 = int_to_ptr.hbm [resolvable:$true] %s280
      %283 = dma.vmem_to_hbm [thread:$0]  %s279, 16, %s281, [#allocation3]
    $region29: #{tpu_custom_call.1} parent=1 // pred_fallthru
      _
    // Predicated region
    $region30: #{tpu_custom_call.1} parent=1 // pred_check
      _
    $region31: #{tpu_custom_call.1} parent=1 // pred_check_branch
      %285 = sbr.rel (0) target = $region33
    $region32: #{tpu_custom_call.1} parent=1 // pred_region
      %287 = dma.done [#allocation3], 16
    $region33: #{tpu_custom_call.1} parent=1 // pred_fallthru
      _
    %288 = vsyncpa [#allocation3], 1

</llo_original>
